<compile_context>
chip_gen: v6e
topology: v6e:2x2x1
jax: 0.10.0
libtpu: 0.0.40
codegen_flags: <defaults>
</compile_context>

<pallas_src>
import jax
import jax.numpy as jnp
from jax.experimental import pallas as pl
from jax.experimental.pallas import tpu as pltpu


def _policy_mean_kernel(obs_ref, w1_ref, b1_ref, w2_ref, b2_ref,
                        w3_ref, b3_ref, mean_ref):
    """One batch tile: 2 hidden tanh layers + sigmoid output on MXU/VPU/EUP."""
    x = obs_ref[...]

    # hidden layer 1: Linear + tanh (dot accumulates in f32 even for bf16 in)
    h = jnp.dot(x, w1_ref[...], preferred_element_type=jnp.float32) + b1_ref[...]
    h = jnp.tanh(h)

    # hidden layer 2: Linear + tanh
    h = jnp.dot(h.astype(w2_ref.dtype), w2_ref[...],
                preferred_element_type=jnp.float32) + b2_ref[...]
    h = jnp.tanh(h)

    # output layer: Linear + sigmoid (output_activation='sigmoid')
    o = jnp.dot(h.astype(w3_ref.dtype), w3_ref[...],
                preferred_element_type=jnp.float32) + b3_ref[...]
    mean_ref[...] = jax.nn.sigmoid(o).astype(mean_ref.dtype)


def _round_up(x, m):
    return ((x + m - 1) // m) * m


def mlp_policy_pg_forward(obs, params, *, batch_tile=None,
                          compute_dtype=jnp.float32, lane_dense_out=True):
    """Returns (mean, std) parameterizing the Normal action distribution.

    obs:    (B, ob_dim) float32
    params: dict with w1,b1,w2,b2,w3,b3 (2-D) and std (ac_dim,)
    """
    B, ob_dim = obs.shape
    layer_size = params["w1"].shape[1]
    ac_dim = params["w3"].shape[1]

    # ---- batch tile selection --------------------------------------------
    if batch_tile is None:
        # 2048 rows amortizes per-grid-step overhead; round_up(cdiv(B,2), 256)
        # guarantees >=2 grid steps when there is enough work so v7x's two
        # TensorCores both get a share of the "parallel" batch axis.
        batch_tile = min(2048, _round_up(pl.cdiv(B, 2), 256))
    if batch_tile >= B:
        batch_tile = B                      # single block == full array dim
    else:
        batch_tile = max(8, _round_up(batch_tile, 8))   # sublane-aligned

    # No wrapper-side padding: Pallas handles the partial last block (tail
    # rows of the VMEM input buffer are garbage but finite through
    # tanh/sigmoid; the corresponding output rows are never written back).
    grid = (pl.cdiv(B, batch_tile),)

    # ---- lane-dense output (pad w3/b3 once; avoids masked vst on ac_dim=8) --
    w3, b3 = params["w3"], params["b3"]
    out_cols = ac_dim
    if lane_dense_out and ac_dim % 128 != 0:
        out_cols = _round_up(ac_dim, 128)
        w3 = jnp.pad(w3, ((0, 0), (0, out_cols - ac_dim)))
        b3 = jnp.pad(b3, ((0, 0), (0, out_cols - ac_dim)))

    # ---- optional bf16 matmul inputs (halves the dominant obs HBM stream) --
    w1, w2 = params["w1"], params["w2"]
    b1, b2 = params["b1"], params["b2"]        # biases stay f32 (post-dot add)
    obs_in = obs
    if compute_dtype != jnp.float32:
        obs_in = obs.astype(compute_dtype)
        w1 = w1.astype(compute_dtype)
        w2 = w2.astype(compute_dtype)
        w3 = w3.astype(compute_dtype)

    def batch_map(i):
        return (i, 0)

    def replicated_map(i):
        return (0, 0)

    # Advisory cost estimate so XLA can overlap surrounding ops.
    itemsize = jnp.dtype(obs_in.dtype).itemsize
    flops = 2 * B * (ob_dim * layer_size + layer_size * layer_size
                     + layer_size * out_cols)
    transcendentals = B * (2 * layer_size + out_cols)
    bytes_accessed = (B * ob_dim * itemsize + B * out_cols * 4
                      + (ob_dim * layer_size + layer_size * layer_size
                         + layer_size * out_cols) * itemsize
                      + (2 * layer_size + out_cols) * 4)
    cost = pl.CostEstimate(flops=flops, transcendentals=transcendentals,
                           bytes_accessed=bytes_accessed)

    kernel = pl.pallas_call(
        _policy_mean_kernel,
        out_shape=jax.ShapeDtypeStruct((B, out_cols), jnp.float32),
        grid_spec=pltpu.PrefetchScalarGridSpec(
            num_scalar_prefetch=0,
            grid=grid,
            in_specs=[
                pl.BlockSpec((batch_tile, ob_dim), batch_map),            # obs tile
                pl.BlockSpec((ob_dim, layer_size), replicated_map),       # w1 (resident)
                pl.BlockSpec((1, layer_size), replicated_map),            # b1
                pl.BlockSpec((layer_size, layer_size), replicated_map),   # w2
                pl.BlockSpec((1, layer_size), replicated_map),            # b2
                pl.BlockSpec((layer_size, out_cols), replicated_map),     # w3
                pl.BlockSpec((1, out_cols), replicated_map),              # b3
            ],
            out_specs=pl.BlockSpec((batch_tile, out_cols), batch_map),    # mean tile
        ),
        compiler_params=pltpu.CompilerParams(
            # Batch tiles are independent -> shard across both TCs on v7x;
            # neutral on single-TC v5e/v6e.
            dimension_semantics=("parallel",),
            # tile=2048 blocks are lane-padded to 128 cols in VMEM; raise the
            # scoped limit above v5e's 16 MiB default (fits all generations).
            vmem_limit_bytes=32 * 1024 * 1024,
        ),
        cost_estimate=cost,
    )

    mean = kernel(obs_in, w1, b1, w2, b2, w3, b3)
    if out_cols != ac_dim:
        mean = mean[:, :ac_dim]

    # std = softplus(std_param) + 0.01 : ac_dim elements, computed once in
    # plain JAX (no reason to redo EUP work every grid step in the kernel).
    std = jax.nn.softplus(params["std"]) + 0.01
    return mean, std


def init_params(key, ob_dim, ac_dim, n_layers, layer_size):
    """Deterministic synthetic init (shapes match ptu.build_mlp + std Parameter)."""
    # TODO(synk): the kernel hard-codes n_layers=2 hidden layers; generalize by
    # stacking hidden weights if other depths are needed.
    assert n_layers == 2, "this script hard-codes n_layers=2 in the kernel"
    ks = jax.random.split(key, 6)

    def lin_w(kw, fan_in, fan_out):
        # torch.nn.Linear default init: U(-1/sqrt(fan_in), 1/sqrt(fan_in))
        bound = 1.0 / jnp.sqrt(fan_in)
        return jax.random.uniform(kw, (fan_in, fan_out), jnp.float32, -bound, bound)

    def lin_b(kb, fan_in, fan_out):
        bound = 1.0 / jnp.sqrt(fan_in)
        return jax.random.uniform(kb, (1, fan_out), jnp.float32, -bound, bound)

    params = {
        "w1": lin_w(ks[0], ob_dim, layer_size),
        "b1": lin_b(ks[1], ob_dim, layer_size),
        "w2": lin_w(ks[2], layer_size, layer_size),
        "b2": lin_b(ks[3], layer_size, layer_size),
        "w3": lin_w(ks[4], layer_size, ac_dim),
        "b3": lin_b(ks[5], layer_size, ac_dim),
        # nn.Parameter(torch.full((ac_dim,), 0.0))
        "std": jnp.zeros((ac_dim,), jnp.float32),
    }
    return params


def reference_forward(obs, params):
    h = jnp.tanh(obs @ params["w1"] + params["b1"])
    h = jnp.tanh(h @ params["w2"] + params["b2"])
    mean = jax.nn.sigmoid(h @ params["w3"] + params["b3"])
    std = jax.nn.softplus(params["std"]) + 0.01
    return mean, std


if __name__ == "__main__":
    ob_dim, ac_dim, n_layers, layer_size = 16, 8, 2, 32

    key = jax.random.PRNGKey(0)
    k1, k2, k3, kp = jax.random.split(key, 4)
    params = init_params(kp, ob_dim, ac_dim, n_layers, layer_size)

    # Case 1: small batch, single full block, default (f32, lane-dense out).
    B1 = 16
    obs1 = jax.random.normal(k1, (B1, ob_dim), jnp.float32)
    mean1, std1 = mlp_policy_pg_forward(obs1, params)
    jax.block_until_ready((mean1, std1))
    ref_mean1, ref_std1 = reference_forward(obs1, params)
    assert mean1.shape == (B1, ac_dim) and std1.shape == (ac_dim,)
    assert jnp.allclose(mean1, ref_mean1, atol=1e-5, rtol=1e-5)
    assert jnp.allclose(std1, ref_std1, atol=1e-6, rtol=1e-6)

    # Case 2: batch not a multiple of 8 -> single block equal to the full batch.
    B2 = 10
    obs2 = jax.random.normal(k2, (B2, ob_dim), jnp.float32)
    mean2, std2 = mlp_policy_pg_forward(obs2, params)
    jax.block_until_ready((mean2, std2))
    ref_mean2, _ = reference_forward(obs2, params)
    assert mean2.shape == (B2, ac_dim)
    assert jnp.allclose(mean2, ref_mean2, atol=1e-5, rtol=1e-5)

    # Case 3: multi-step grid with a partial last block (no wrapper padding),
    # narrow (non-lane-dense) output path also exercised.
    B3 = 20
    obs3 = jax.random.normal(k3, (B3, ob_dim), jnp.float32)
    mean3, _ = mlp_policy_pg_forward(obs3, params, batch_tile=8,
                                     lane_dense_out=False)
    jax.block_until_ready(mean3)
    ref_mean3, _ = reference_forward(obs3, params)
    assert mean3.shape == (B3, ac_dim)
    assert jnp.allclose(mean3, ref_mean3, atol=1e-5, rtol=1e-5)

    # Case 4: bf16 matmul inputs (v6e/v7x HBM-saving path); looser tolerance.
    mean4, _ = mlp_policy_pg_forward(obs1, params, compute_dtype=jnp.bfloat16)
    jax.block_until_ready(mean4)
    assert mean4.shape == (B1, ac_dim)
    assert jnp.allclose(mean4, ref_mean1, atol=2e-2, rtol=2e-2)

    # TODO(synk): Distribution sampling / log_prob (torch.distributions.Normal)
    # and the Adam update() are left to the caller; the kernel produces the
    # distribution parameters (mean, std).
    print("KERNEL_OK")
</pallas_src>

<mosaic_0001>
module attributes {stable_mosaic.version = 11 : i64} {
  func.func @_policy_mean_kernel(%arg0: i32, %arg1: memref<16x16xf32, #tpu.memory_space<vmem>>, %arg2: memref<16x32xf32, #tpu.memory_space<vmem>>, %arg3: memref<1x32xf32, #tpu.memory_space<vmem>>, %arg4: memref<32x32xf32, #tpu.memory_space<vmem>>, %arg5: memref<1x32xf32, #tpu.memory_space<vmem>>, %arg6: memref<32x128xf32, #tpu.memory_space<vmem>>, %arg7: memref<1x128xf32, #tpu.memory_space<vmem>>, %arg8: memref<16x128xf32, #tpu.memory_space<vmem>>) attributes {dimension_semantics = [#tpu.dimension_semantics<parallel>], iteration_bounds = array<i64: 1>, scalar_prefetch = 0 : i64, scratch_operands = 0 : i64, tpu.core_type = #tpu.core_type<tc>, window_params = [{transform_indices = @transform_0, window_bounds = array<i64: 16, 16>}, {pipeline_mode = #tpu.pipeline_mode<synchronous>, transform_indices = @transform_1, window_bounds = array<i64: 16, 32>}, {pipeline_mode = #tpu.pipeline_mode<synchronous>, transform_indices = @transform_2, window_bounds = array<i64: 1, 32>}, {pipeline_mode = #tpu.pipeline_mode<synchronous>, transform_indices = @transform_3, window_bounds = array<i64: 32, 32>}, {pipeline_mode = #tpu.pipeline_mode<synchronous>, transform_indices = @transform_4, window_bounds = array<i64: 1, 32>}, {pipeline_mode = #tpu.pipeline_mode<synchronous>, transform_indices = @transform_5, window_bounds = array<i64: 32, 128>}, {pipeline_mode = #tpu.pipeline_mode<synchronous>, transform_indices = @transform_6, window_bounds = array<i64: 1, 128>}, {transform_indices = @transform_7, window_bounds = array<i64: 16, 128>}]} {
    %c0 = arith.constant 0 : index
    %c0_0 = arith.constant 0 : index
    %0 = vector.load %arg1[%c0, %c0_0] : memref<16x16xf32, #tpu.memory_space<vmem>>, vector<16x16xf32>
    %c0_1 = arith.constant 0 : index
    %c0_2 = arith.constant 0 : index
    %1 = vector.load %arg2[%c0_1, %c0_2] : memref<16x32xf32, #tpu.memory_space<vmem>>, vector<16x32xf32>
    %cst = arith.constant dense<0.000000e+00> : vector<16x32xf32>
    %2 = tpu.matmul %0, %1, %cst {dimension_numbers = #tpu.dot_dimension_numbers<[1], [0], [0], [1], [0, 0, 1, 1], [], []>} : vector<16x16xf32>, vector<16x32xf32>, vector<16x32xf32> -> vector<16x32xf32>
    %c0_3 = arith.constant 0 : index
    %c0_4 = arith.constant 0 : index
    %3 = vector.load %arg3[%c0_3, %c0_4] : memref<1x32xf32, #tpu.memory_space<vmem>>, vector<1x32xf32>
    %4 = vector.broadcast %3 : vector<1x32xf32> to vector<16x32xf32>
    %5 = arith.addf %2, %4 : vector<16x32xf32>
    %6 = math.tanh %5 : vector<16x32xf32>
    %c0_5 = arith.constant 0 : index
    %c0_6 = arith.constant 0 : index
    %7 = vector.load %arg4[%c0_5, %c0_6] : memref<32x32xf32, #tpu.memory_space<vmem>>, vector<32x32xf32>
    %cst_7 = arith.constant dense<0.000000e+00> : vector<16x32xf32>
    %8 = tpu.matmul %6, %7, %cst_7 {dimension_numbers = #tpu.dot_dimension_numbers<[1], [0], [0], [1], [0, 0, 1, 1], [], []>} : vector<16x32xf32>, vector<32x32xf32>, vector<16x32xf32> -> vector<16x32xf32>
    %c0_8 = arith.constant 0 : index
    %c0_9 = arith.constant 0 : index
    %9 = vector.load %arg5[%c0_8, %c0_9] : memref<1x32xf32, #tpu.memory_space<vmem>>, vector<1x32xf32>
    %10 = vector.broadcast %9 : vector<1x32xf32> to vector<16x32xf32>
    %11 = arith.addf %8, %10 : vector<16x32xf32>
    %12 = math.tanh %11 : vector<16x32xf32>
    %c0_10 = arith.constant 0 : index
    %c0_11 = arith.constant 0 : index
    %13 = vector.load %arg6[%c0_10, %c0_11] : memref<32x128xf32, #tpu.memory_space<vmem>>, vector<32x128xf32>
    %cst_12 = arith.constant dense<0.000000e+00> : vector<16x128xf32>
    %14 = tpu.matmul %12, %13, %cst_12 {dimension_numbers = #tpu.dot_dimension_numbers<[1], [0], [0], [1], [0, 0, 1, 1], [], []>} : vector<16x32xf32>, vector<32x128xf32>, vector<16x128xf32> -> vector<16x128xf32>
    %c0_13 = arith.constant 0 : index
    %c0_14 = arith.constant 0 : index
    %15 = vector.load %arg7[%c0_13, %c0_14] : memref<1x128xf32, #tpu.memory_space<vmem>>, vector<1x128xf32>
    %16 = vector.broadcast %15 : vector<1x128xf32> to vector<16x128xf32>
    %17 = arith.addf %14, %16 : vector<16x128xf32>
    %18 = arith.negf %17 : vector<16x128xf32>
    %19 = math.exp %18 : vector<16x128xf32>
    %cst_15 = arith.constant 1.000000e+00 : f32
    %20 = vector.broadcast %cst_15 : f32 to vector<16x128xf32>
    %21 = arith.addf %20, %19 : vector<16x128xf32>
    %22 = arith.divf %20, %21 : vector<16x128xf32>
    %c0_16 = arith.constant 0 : index
    %c0_17 = arith.constant 0 : index
    %23 = vector.load %arg8[%c0_16, %c0_17] : memref<16x128xf32, #tpu.memory_space<vmem>>, vector<16x128xf32>
    tpu.vector_store %arg8[%c0_16, %c0_17], %22 {strides = array<i32>} : memref<16x128xf32, #tpu.memory_space<vmem>>, vector<16x128xf32>,
    return
  }
  func.func @transform_0(%arg0: i32) -> (i32, i32) {
    %c0_i32 = arith.constant 0 : i32
    %c0_i32_0 = arith.constant 0 : i32
    return %arg0, %c0_i32 : i32, i32
  }
  func.func @transform_1(%arg0: i32) -> (i32, i32) {
    %c0_i32 = arith.constant 0 : i32
    %c0_i32_0 = arith.constant 0 : i32
    %c0_i32_1 = arith.constant 0 : i32
    return %c0_i32, %c0_i32_0 : i32, i32
  }
  func.func @transform_2(%arg0: i32) -> (i32, i32) {
    %c0_i32 = arith.constant 0 : i32
    %c0_i32_0 = arith.constant 0 : i32
    %c0_i32_1 = arith.constant 0 : i32
    return %c0_i32, %c0_i32_0 : i32, i32
  }
  func.func @transform_3(%arg0: i32) -> (i32, i32) {
    %c0_i32 = arith.constant 0 : i32
    %c0_i32_0 = arith.constant 0 : i32
    %c0_i32_1 = arith.constant 0 : i32
    return %c0_i32, %c0_i32_0 : i32, i32
  }
  func.func @transform_4(%arg0: i32) -> (i32, i32) {
    %c0_i32 = arith.constant 0 : i32
    %c0_i32_0 = arith.constant 0 : i32
    %c0_i32_1 = arith.constant 0 : i32
    return %c0_i32, %c0_i32_0 : i32, i32
  }
  func.func @transform_5(%arg0: i32) -> (i32, i32) {
    %c0_i32 = arith.constant 0 : i32
    %c0_i32_0 = arith.constant 0 : i32
    %c0_i32_1 = arith.constant 0 : i32
    return %c0_i32, %c0_i32_0 : i32, i32
  }
  func.func @transform_6(%arg0: i32) -> (i32, i32) {
    %c0_i32 = arith.constant 0 : i32
    %c0_i32_0 = arith.constant 0 : i32
    %c0_i32_1 = arith.constant 0 : i32
    return %c0_i32, %c0_i32_0 : i32, i32
  }
  func.func @transform_7(%arg0: i32) -> (i32, i32) {
    %c0_i32 = arith.constant 0 : i32
    %c0_i32_0 = arith.constant 0 : i32
    return %arg0, %c0_i32 : i32, i32
  }
}

</mosaic_0001>

<llo_original>
// kernel: tpu_custom_call.1
$region0: #{tpu_custom_call.1}
  #allocation0 [shape = 'u32[]', space=smem, size = 0x4, offset = 0x4, fixed_abs, tag = 'smem constant byte address 0x4 - core index']
  #allocation1 [shape = 'u32[144,128]{1,0:T(1,128)}', space=vmem, size = 0x12000, scoped, tag = 'internal scratch']
  %s0 = inlined_call_operand.hbm [shape: f32[16,16], index: 0, kind: input, shape index: {}]
  %s1 = inlined_call_operand.hbm [shape: f32[16,32], index: 1, kind: input, shape index: {}]
  %s2 = inlined_call_operand.vmem [shape: f32[1,32], index: 2, kind: input, shape index: {}]
  %s3 = inlined_call_operand.hbm [shape: f32[32,32], index: 3, kind: input, shape index: {}]
  %s4 = inlined_call_operand.vmem [shape: f32[1,32], index: 4, kind: input, shape index: {}]
  %s5 = inlined_call_operand.hbm [shape: f32[32,128], index: 5, kind: input, shape index: {}]
  %s6 = inlined_call_operand.vmem [shape: f32[1,128], index: 6, kind: input, shape index: {}]
  %s7 = inlined_call_operand.hbm [shape: f32[16,128], index: 7, kind: output, shape index: {}]
  %s8 = sld [smem:[#allocation0]]
  $region54: #{tpu_custom_call.1} parent=0
    _
  %s10 = ssub.s32 1, %s8
  %s11 = scalar_select 0, %s10, %s8
  $region1: #{tpu_custom_call.1} parent=0
    #allocation2 [shape = 'u8[8192]{0}', space=vmem, size = 0x2000, scoped, tag = 'input window, operand 0, single buffered']
    #allocation3 [shape = 's32[1]{0}', space=sflag, size = 0x4, scoped, tag = 'scoped memory for tpu_custom_call.1']
    #allocation4 [shape = 's32[1]{0}', space=sflag, size = 0x4, scoped, tag = 'scoped memory for tpu_custom_call.1']
    #allocation5 [shape = 'u8[8192]{0}', space=vmem, size = 0x2000, scoped, tag = 'input window, operand 1, single buffered']
    #allocation6 [shape = 's32[1]{0}', space=sflag, size = 0x4, scoped, tag = 'scoped memory for tpu_custom_call.1']
    #allocation7 [shape = 'u8[16384]{0}', space=vmem, size = 0x4000, scoped, tag = 'input window, operand 3, single buffered']
    #allocation8 [shape = 'u8[16384]{0}', space=vmem, size = 0x4000, scoped, tag = 'input window, operand 5, single buffered']
    #allocation9 [shape = 's32[1]{0}', space=sflag, size = 0x4, scoped, tag = 'scoped memory for tpu_custom_call.1']
    #allocation10 [shape = 'u8[8192]{0}', space=vmem, size = 0x2000, scoped, tag = 'output window, operand 0, single buffered']
    %12 = vsyncpa [#allocation3], 0
    %13 = vsyncpa [#allocation6], 0
    %14 = vsyncpa [#allocation9], 0
    %15 = vsyncpa [#allocation4], 0
    // Predicated region
    $region2: #{tpu_custom_call.1} parent=1 // pred_check
      _
    $region3: #{tpu_custom_call.1} parent=1 // pred_check_branch
      %17 = sbr.rel (0) target = $region5
    $region4: #{tpu_custom_call.1} parent=1 // pred_region
      %s19 = ssub.s32 256, 256
      %20 = vsyncadd [#allocation3], %s19
      %s21 = sshll.u32 [#allocation2], 4
      %s22 = int_to_ptr.vmem [resolvable:$true] %s21
      %27 = dma.hbm_to_vmem [thread:$0]  %s0, 256, %s22, [#allocation3], 128, 128, 8
    $region5: #{tpu_custom_call.1} parent=1 // pred_fallthru
      _
    // Predicated region
    $region6: #{tpu_custom_call.1} parent=1 // pred_check
      _
    $region7: #{tpu_custom_call.1} parent=1 // pred_check_branch
      %29 = sbr.rel (0) target = $region9
    $region8: #{tpu_custom_call.1} parent=1 // pred_region
      %s31 = ssub.s32 256, 256
      %32 = vsyncadd [#allocation6], %s31
      %s33 = sshll.u32 [#allocation5], 4
      %s34 = int_to_ptr.vmem [resolvable:$true] %s33
      %39 = dma.hbm_to_vmem [thread:$0]  %s1, 256, %s34, [#allocation6], 128, 128, 8
    $region9: #{tpu_custom_call.1} parent=1 // pred_fallthru
      _
    // Predicated region
    $region10: #{tpu_custom_call.1} parent=1 // pred_check
      _
    $region11: #{tpu_custom_call.1} parent=1 // pred_check_branch
      %41 = sbr.rel (0) target = $region13
    $region12: #{tpu_custom_call.1} parent=1 // pred_region
      _
    $region13: #{tpu_custom_call.1} parent=1 // pred_fallthru
      _
    // Predicated region
    $region14: #{tpu_custom_call.1} parent=1 // pred_check
      _
    $region15: #{tpu_custom_call.1} parent=1 // pred_check_branch
      %43 = sbr.rel (0) target = $region17
    $region16: #{tpu_custom_call.1} parent=1 // pred_region
      %s45 = ssub.s32 512, 512
      %46 = vsyncadd [#allocation6], %s45
      %s47 = sshll.u32 [#allocation7], 4
      %s48 = int_to_ptr.vmem [resolvable:$true] %s47
      %53 = dma.hbm_to_vmem [thread:$0]  %s3, 512, %s48, [#allocation6], 128, 128, 8
    $region17: #{tpu_custom_call.1} parent=1 // pred_fallthru
      _
    // Predicated region
    $region18: #{tpu_custom_call.1} parent=1 // pred_check
      _
    $region19: #{tpu_custom_call.1} parent=1 // pred_check_branch
      %55 = sbr.rel (0) target = $region21
    $region20: #{tpu_custom_call.1} parent=1 // pred_region
      _
    $region21: #{tpu_custom_call.1} parent=1 // pred_fallthru
      _
    // Predicated region
    $region22: #{tpu_custom_call.1} parent=1 // pred_check
      _
    $region23: #{tpu_custom_call.1} parent=1 // pred_check_branch
      %57 = sbr.rel (0) target = $region25
    $region24: #{tpu_custom_call.1} parent=1 // pred_region
      %s59 = ssub.s32 512, 512
      %60 = vsyncadd [#allocation9], %s59
      %s61 = sshll.u32 [#allocation8], 4
      %s62 = int_to_ptr.vmem [resolvable:$true] %s61
      %67 = dma.hbm_to_vmem [thread:$0]  %s5, 512, %s62, [#allocation9], 128, 128, 8
    $region25: #{tpu_custom_call.1} parent=1 // pred_fallthru
      _
    // Predicated region
    $region26: #{tpu_custom_call.1} parent=1 // pred_check
      _
    $region27: #{tpu_custom_call.1} parent=1 // pred_check_branch
      %69 = sbr.rel (0) target = $region29
    $region28: #{tpu_custom_call.1} parent=1 // pred_region
      _
    $region29: #{tpu_custom_call.1} parent=1 // pred_fallthru
      _
    // Predicated region
    $region30: #{tpu_custom_call.1} parent=1 // pred_check
      _
    $region31: #{tpu_custom_call.1} parent=1 // pred_check_branch
      %71 = sbr.rel (0) target = $region33
    $region32: #{tpu_custom_call.1} parent=1 // pred_region
      %72 = dma.done [#allocation3], 256
    $region33: #{tpu_custom_call.1} parent=1 // pred_fallthru
      _
    // Predicated region
    $region34: #{tpu_custom_call.1} parent=1 // pred_check
      _
    $region35: #{tpu_custom_call.1} parent=1 // pred_check_branch
      %74 = sbr.rel (0) target = $region37
    $region36: #{tpu_custom_call.1} parent=1 // pred_region
      %75 = dma.done [#allocation6], 256
    $region37: #{tpu_custom_call.1} parent=1 // pred_fallthru
      _
    // Predicated region
    $region38: #{tpu_custom_call.1} parent=1 // pred_check
      _
    $region39: #{tpu_custom_call.1} parent=1 // pred_check_branch
      %77 = sbr.rel (0) target = $region41
    $region40: #{tpu_custom_call.1} parent=1 // pred_region
      %78 = dma.done [#allocation6], 512
    $region41: #{tpu_custom_call.1} parent=1 // pred_fallthru
      _
    // Predicated region
    $region42: #{tpu_custom_call.1} parent=1 // pred_check
      _
    $region43: #{tpu_custom_call.1} parent=1 // pred_check_branch
      %80 = sbr.rel (0) target = $region45
    $region44: #{tpu_custom_call.1} parent=1 // pred_region
      %81 = dma.done [#allocation9], 512
    $region45: #{tpu_custom_call.1} parent=1 // pred_fallthru
      _
    %v82 = vld [vmem:[#allocation2] sm:$0xff]
    %v83 = vld [vmem:[#allocation2 + $0x8] sm:$0xff]
    %v84 = vld [vmem:[#allocation5] sm:$0xff]
    %v85 = vld [vmem:[#allocation5 + $0x8] sm:$0xff]
    %v86 = vld [vmem:[%s2] sm:$0x1]
    %v88 = vlaneseq
    %v89 = vshrl.u32 %v88, 7
    %v90 = vsub.s32 0, %v89
    %v91 = vrot.slane %v86, %v90
    %vm93 = vcmask 130048
    %v95 = vsel %vm93, %v82, 0
    %v98 = vsel %vm93, %v83, 0
    %100 = vmatprep.subr.mxu0 0.0
    %101 = vmatpush1.msra.mxu0 0.0
    %102 = vmatprep.subr.mxu0 0.0
    %103 = vmatpush1.msra.mxu0 0.0
    %104 = vmatprep.subr.mxu0 0.0
    %105 = vmatpush1.msra.mxu0 0.0
    %106 = vmatprep.subr.mxu0 0.0
    %107 = vmatpush1.msra.mxu0 0.0
    %108 = vmatprep.subr.mxu0 0.0
    %109 = vmatpush1.msra.mxu0 0.0
    %110 = vmatprep.subr.mxu0 0.0
    %111 = vmatpush1.msra.mxu0 0.0
    %112 = vmatprep.subr.mxu0 0.0
    %113 = vmatpush1.msra.mxu0 0.0
    %114 = vmatprep.subr.mxu0 0.0
    %115 = vmatpush1.msra.mxu0 0.0
    %116 = vmatprep.subr.mxu0 0.0
    %117 = vmatpush1.msra.mxu0 0.0
    %118 = vmatprep.subr.mxu0 0.0
    %119 = vmatpush1.msra.mxu0 0.0
    %120 = vmatprep.subr.mxu0 0.0
    %121 = vmatpush1.msra.mxu0 0.0
    %122 = vmatprep.subr.mxu0 0.0
    %123 = vmatpush1.msra.mxu0 0.0
    %124 = vmatprep.subr.mxu0 0.0
    %125 = vmatpush1.msra.mxu0 0.0
    %126 = vmatprep.subr.mxu0 0.0
    %127 = vmatpush1.msra.mxu0 0.0
    %128 = vmatprep.subr.mxu0 0.0
    %129 = vmatpush1.msra.mxu0 %v85
    %130 = vmatprep.subr.mxu0 0.0
    %131 = vmatpush1.msra.mxu0 %v84
    %132 = vmatprep.subr.mxu0 0.0
    %133 = vmatpush2.msra.mxu0 0.0
    %134 = vmatprep.subr.mxu0 0.0
    %135 = vmatpush2.msra.mxu0 0.0
    %136 = vmatprep.subr.mxu0 0.0
    %137 = vmatpush2.msra.mxu0 0.0
    %138 = vmatprep.subr.mxu0 0.0
    %139 = vmatpush2.msra.mxu0 0.0
    %140 = vmatprep.subr.mxu0 0.0
    %141 = vmatpush2.msra.mxu0 0.0
    %142 = vmatprep.subr.mxu0 0.0
    %143 = vmatpush2.msra.mxu0 0.0
    %144 = vmatprep.subr.mxu0 0.0
    %145 = vmatpush2.msra.mxu0 0.0
    %146 = vmatprep.subr.mxu0 0.0
    %147 = vmatpush2.msra.mxu0 0.0
    %148 = vmatprep.subr.mxu0 0.0
    %149 = vmatpush2.msra.mxu0 0.0
    %150 = vmatprep.subr.mxu0 0.0
    %151 = vmatpush2.msra.mxu0 0.0
    %152 = vmatprep.subr.mxu0 0.0
    %153 = vmatpush2.msra.mxu0 0.0
    %154 = vmatprep.subr.mxu0 0.0
    %155 = vmatpush2.msra.mxu0 0.0
    %156 = vmatprep.subr.mxu0 0.0
    %157 = vmatpush2.msra.mxu0 0.0
    %158 = vmatprep.subr.mxu0 0.0
    %159 = vmatpush2.msra.mxu0 0.0
    %160 = vmatprep.subr.mxu0 0.0
    %161 = vmatpush2.msra.mxu0 0.0
    %162 = vmatprep.subr.mxu0 0.0
    %163 = vmatpush2.msra.mxu0 0.0
    %164 = vmatprep.mubr.f32.mxu0 0.0
    %165 = vmatmul.mubr.f32.gmra.mxu0 %v95
    %v166 = vpop.f32.mrf.mxu0
    %v167 = vadd.f32 %v91, %v166
    %v168 = vpop.f32.mrf.mxu0
    %169 = vmatprep.mubr.f32.mxu0 0.0
    %170 = vmatmul.mubr.f32.gmra.mxu0 %v98
    %v171 = vpop.f32.mrf.mxu0
    %v172 = vadd.f32 %v91, %v171
    %v173 = vpop.f32.mrf.mxu0
    %174 = vdwg.mxu0
    %v175 = vtanh.pop %v167
    %v176 = vtanh.pop %v172
    %v177 = vld [vmem:[#allocation7] sm:$0xff]
    %v178 = vld [vmem:[#allocation7 + $0x8] sm:$0xff]
    %v179 = vld [vmem:[#allocation7 + $0x10] sm:$0xff]
    %v180 = vld [vmem:[#allocation7 + $0x18] sm:$0xff]
    %v181 = vld [vmem:[%s4] sm:$0x1]
    %v183 = vlaneseq
    %v184 = vshrl.u32 %v183, 7
    %v185 = vsub.s32 0, %v184
    %v186 = vrot.slane %v181, %v185
    %vm188 = vcmask 261120
    %v190 = vsel %vm188, %v175, 0
    %v193 = vsel %vm188, %v176, 0
    %195 = vmatprep.subr.mxu0 0.0
    %196 = vmatpush1.msra.mxu0 0.0
    %197 = vmatprep.subr.mxu0 0.0
    %198 = vmatpush1.msra.mxu0 0.0
    %199 = vmatprep.subr.mxu0 0.0
    %200 = vmatpush1.msra.mxu0 0.0
    %201 = vmatprep.subr.mxu0 0.0
    %202 = vmatpush1.msra.mxu0 0.0
    %203 = vmatprep.subr.mxu0 0.0
    %204 = vmatpush1.msra.mxu0 0.0
    %205 = vmatprep.subr.mxu0 0.0
    %206 = vmatpush1.msra.mxu0 0.0
    %207 = vmatprep.subr.mxu0 0.0
    %208 = vmatpush1.msra.mxu0 0.0
    %209 = vmatprep.subr.mxu0 0.0
    %210 = vmatpush1.msra.mxu0 0.0
    %211 = vmatprep.subr.mxu0 0.0
    %212 = vmatpush1.msra.mxu0 0.0
    %213 = vmatprep.subr.mxu0 0.0
    %214 = vmatpush1.msra.mxu0 0.0
    %215 = vmatprep.subr.mxu0 0.0
    %216 = vmatpush1.msra.mxu0 0.0
    %217 = vmatprep.subr.mxu0 0.0
    %218 = vmatpush1.msra.mxu0 0.0
    %219 = vmatprep.subr.mxu0 0.0
    %220 = vmatpush1.msra.mxu0 %v180
    %221 = vmatprep.subr.mxu0 0.0
    %222 = vmatpush1.msra.mxu0 %v179
    %223 = vmatprep.subr.mxu0 0.0
    %224 = vmatpush1.msra.mxu0 %v178
    %225 = vmatprep.subr.mxu0 0.0
    %226 = vmatpush1.msra.mxu0 %v177
    %227 = vmatprep.subr.mxu0 0.0
    %228 = vmatpush2.msra.mxu0 0.0
    %229 = vmatprep.subr.mxu0 0.0
    %230 = vmatpush2.msra.mxu0 0.0
    %231 = vmatprep.subr.mxu0 0.0
    %232 = vmatpush2.msra.mxu0 0.0
    %233 = vmatprep.subr.mxu0 0.0
    %234 = vmatpush2.msra.mxu0 0.0
    %235 = vmatprep.subr.mxu0 0.0
    %236 = vmatpush2.msra.mxu0 0.0
    %237 = vmatprep.subr.mxu0 0.0
    %238 = vmatpush2.msra.mxu0 0.0
    %239 = vmatprep.subr.mxu0 0.0
    %240 = vmatpush2.msra.mxu0 0.0
    %241 = vmatprep.subr.mxu0 0.0
    %242 = vmatpush2.msra.mxu0 0.0
    %243 = vmatprep.subr.mxu0 0.0
    %244 = vmatpush2.msra.mxu0 0.0
    %245 = vmatprep.subr.mxu0 0.0
    %246 = vmatpush2.msra.mxu0 0.0
    %247 = vmatprep.subr.mxu0 0.0
    %248 = vmatpush2.msra.mxu0 0.0
    %249 = vmatprep.subr.mxu0 0.0
    %250 = vmatpush2.msra.mxu0 0.0
    %251 = vmatprep.subr.mxu0 0.0
    %252 = vmatpush2.msra.mxu0 0.0
    %253 = vmatprep.subr.mxu0 0.0
    %254 = vmatpush2.msra.mxu0 0.0
    %255 = vmatprep.subr.mxu0 0.0
    %256 = vmatpush2.msra.mxu0 0.0
    %257 = vmatprep.subr.mxu0 0.0
    %258 = vmatpush2.msra.mxu0 0.0
    %259 = vmatprep.mubr.f32.mxu0 0.0
    %260 = vmatmul.mubr.f32.gmra.mxu0 %v190
    %v261 = vpop.f32.mrf.mxu0
    %v262 = vadd.f32 %v186, %v261
    %v263 = vpop.f32.mrf.mxu0
    %264 = vmatprep.mubr.f32.mxu0 0.0
    %265 = vmatmul.mubr.f32.gmra.mxu0 %v193
    %v266 = vpop.f32.mrf.mxu0
    %v267 = vadd.f32 %v186, %v266
    %v268 = vpop.f32.mrf.mxu0
    %269 = vdwg.mxu0
    %v270 = vtanh.pop %v262
    %v271 = vtanh.pop %v267
    %v272 = vld [vmem:[#allocation8] sm:$0xff]
    %v273 = vld [vmem:[#allocation8 + $0x8] sm:$0xff]
    %v274 = vld [vmem:[#allocation8 + $0x10] sm:$0xff]
    %v275 = vld [vmem:[#allocation8 + $0x18] sm:$0xff]
    %v276 = vld [vmem:[%s6] sm:$0x1]
    %v278 = vlaneseq
    %v279 = vshrl.u32 %v278, 7
    %v280 = vsub.s32 0, %v279
    %v281 = vrot.slane %v276, %v280
    %v284 = vsel %vm188, %v270, 0
    %v287 = vsel %vm188, %v271, 0
    %289 = vmatprep.subr.mxu0 0.0
    %290 = vmatpush1.msra.mxu0 0.0
    %291 = vmatprep.subr.mxu0 0.0
    %292 = vmatpush1.msra.mxu0 0.0
    %293 = vmatprep.subr.mxu0 0.0
    %294 = vmatpush1.msra.mxu0 0.0
    %295 = vmatprep.subr.mxu0 0.0
    %296 = vmatpush1.msra.mxu0 0.0
    %297 = vmatprep.subr.mxu0 0.0
    %298 = vmatpush1.msra.mxu0 0.0
    %299 = vmatprep.subr.mxu0 0.0
    %300 = vmatpush1.msra.mxu0 0.0
    %301 = vmatprep.subr.mxu0 0.0
    %302 = vmatpush1.msra.mxu0 0.0
    %303 = vmatprep.subr.mxu0 0.0
    %304 = vmatpush1.msra.mxu0 0.0
    %305 = vmatprep.subr.mxu0 0.0
    %306 = vmatpush1.msra.mxu0 0.0
    %307 = vmatprep.subr.mxu0 0.0
    %308 = vmatpush1.msra.mxu0 0.0
    %309 = vmatprep.subr.mxu0 0.0
    %310 = vmatpush1.msra.mxu0 0.0
    %311 = vmatprep.subr.mxu0 0.0
    %312 = vmatpush1.msra.mxu0 0.0
    %313 = vmatprep.subr.mxu0 0.0
    %314 = vmatpush1.msra.mxu0 %v275
    %315 = vmatprep.subr.mxu0 0.0
    %316 = vmatpush1.msra.mxu0 %v274
    %317 = vmatprep.subr.mxu0 0.0
    %318 = vmatpush1.msra.mxu0 %v273
    %319 = vmatprep.subr.mxu0 0.0
    %320 = vmatpush1.msra.mxu0 %v272
    %321 = vmatprep.subr.mxu0 0.0
    %322 = vmatpush2.msra.mxu0 0.0
    %323 = vmatprep.subr.mxu0 0.0
    %324 = vmatpush2.msra.mxu0 0.0
    %325 = vmatprep.subr.mxu0 0.0
    %326 = vmatpush2.msra.mxu0 0.0
    %327 = vmatprep.subr.mxu0 0.0
    %328 = vmatpush2.msra.mxu0 0.0
    %329 = vmatprep.subr.mxu0 0.0
    %330 = vmatpush2.msra.mxu0 0.0
    %331 = vmatprep.subr.mxu0 0.0
    %332 = vmatpush2.msra.mxu0 0.0
    %333 = vmatprep.subr.mxu0 0.0
    %334 = vmatpush2.msra.mxu0 0.0
    %335 = vmatprep.subr.mxu0 0.0
    %336 = vmatpush2.msra.mxu0 0.0
    %337 = vmatprep.subr.mxu0 0.0
    %338 = vmatpush2.msra.mxu0 0.0
    %339 = vmatprep.subr.mxu0 0.0
    %340 = vmatpush2.msra.mxu0 0.0
    %341 = vmatprep.subr.mxu0 0.0
    %342 = vmatpush2.msra.mxu0 0.0
    %343 = vmatprep.subr.mxu0 0.0
    %344 = vmatpush2.msra.mxu0 0.0
    %345 = vmatprep.subr.mxu0 0.0
    %346 = vmatpush2.msra.mxu0 0.0
    %347 = vmatprep.subr.mxu0 0.0
    %348 = vmatpush2.msra.mxu0 0.0
    %349 = vmatprep.subr.mxu0 0.0
    %350 = vmatpush2.msra.mxu0 0.0
    %351 = vmatprep.subr.mxu0 0.0
    %352 = vmatpush2.msra.mxu0 0.0
    %353 = vmatprep.mubr.f32.mxu0 0.0
    %354 = vmatmul.mubr.f32.gmra.mxu0 %v284
    %v355 = vpop.f32.mrf.mxu0
    %v356 = vadd.f32 %v281, %v355
    %v357 = vpop.f32.mrf.mxu0
    %358 = vmatprep.mubr.f32.mxu0 0.0
    %359 = vmatmul.mubr.f32.gmra.mxu0 %v287
    %v360 = vpop.f32.mrf.mxu0
    %v361 = vadd.f32 %v281, %v360
    %v362 = vpop.f32.mrf.mxu0
    %363 = vdwg.mxu0
    %v364 = vxor.u32 %v356, 2147483648
    %v365 = vxor.u32 %v361, 2147483648
    %v366 = vmul.f32 %v364, 1.442695
    %v367 = vpow.pop %v366
    %v368 = vmul.f32 %v365, 1.442695
    %v369 = vpow.pop %v368
    %v370 = vadd.f32 %v367, 1.0
    %v371 = vadd.f32 %v369, 1.0
    %v372 = vrcp.pop %v370
    %v373 = vmul.f32 1.0, %v372
    %v374 = vrcp.pop %v371
    %v375 = vmul.f32 1.0, %v374
    %376 = vst [vmem:[#allocation10] sm:$0xff] %v373
    %377 = vst [vmem:[#allocation10 + $0x8] sm:$0xff] %v375
    // Predicated region
    $region46: #{tpu_custom_call.1} parent=1 // pred_check
      _
    $region47: #{tpu_custom_call.1} parent=1 // pred_check_branch
      %379 = sbr.rel (0) target = $region49
    $region48: #{tpu_custom_call.1} parent=1 // pred_region
      %s381 = ssub.s32 256, 256
      %382 = vsyncadd [#allocation4], %s381
      %s383 = sshll.u32 [#allocation10], 4
      %s384 = int_to_ptr.vmem [resolvable:$true] %s383
      %389 = dma.vmem_to_hbm [thread:$0]  %s384, 256, %s7, [#allocation4], 128, 128, 8
    $region49: #{tpu_custom_call.1} parent=1 // pred_fallthru
      _
    // Predicated region
    $region50: #{tpu_custom_call.1} parent=1 // pred_check
      _
    $region51: #{tpu_custom_call.1} parent=1 // pred_check_branch
      %391 = sbr.rel (0) target = $region53
    $region52: #{tpu_custom_call.1} parent=1 // pred_region
      %392 = dma.done [#allocation4], 256
    $region53: #{tpu_custom_call.1} parent=1 // pred_fallthru
      _
    %393 = vsyncpa [#allocation3], 1
    %394 = vsyncpa [#allocation6], 1
    %395 = vsyncpa [#allocation9], 1
    %396 = vsyncpa [#allocation4], 1

</llo_original>
